<compile_context>
chip_gen: v6e
topology: v6e:2x2x1
jax: 0.10.0
libtpu: 0.0.40
codegen_flags: <defaults>
</compile_context>

<pallas_src>
import functools

import jax
import jax.numpy as jnp
from jax.experimental import pallas as pl
from jax.experimental.pallas import tpu as pltpu


def _round_up(n: int, m: int) -> int:
    return ((n + m - 1) // m) * m


def _cdiv(a: int, b: int) -> int:
    return (a + b - 1) // b


# Lane-dense alignment for feature dims. 128 = vreg lane width and exactly matches the v5e MXU;
# on v6e/v7x (2x256 MXU) a 256 alignment can raise MXU fill for large hidden dims at the cost of
# extra padded FLOPs -- 128 kept as the default.
_LANE = 128


def _mlp_chain_kernel(*refs, num_layers: int, relu_output: bool, compute_dtype):
    """refs = (x_ref, w0_ref, b0_ref, ..., w_{L-1}_ref, b_{L-1}_ref, o_ref).

    Chains y = x @ W_l + b_l with ReLU (+ eval-mode dropout == identity) between layers.
    Activations stay in VMEM/vregs; matmuls run on the MXU with f32 accumulation.
    """
    x_ref = refs[0]
    o_ref = refs[-1]
    wb = refs[1:-1]

    h = x_ref[...]                      # (TB, D0p) compute_dtype
    out = None
    for l in range(num_layers):
        w = wb[2 * l][...]              # (D_l p, D_{l+1} p) compute_dtype
        b = wb[2 * l + 1][...]          # (1, D_{l+1} p) f32
        y = jnp.dot(h, w, preferred_element_type=jnp.float32) + b   # f32 acc + bias
        if (l < num_layers - 1) or relu_output:
            # ReLU after the bf16 downcast: packed-bf16 elementwise on v6e/v7x halves VALU work,
            # numerically identical to f32 ReLU-then-cast.  Dropout (eval mode) == identity.
            h = jnp.maximum(y.astype(compute_dtype), 0)
            out = h
        else:
            out = y
    o_ref[...] = out.astype(o_ref.dtype)


def prepare_feature_net(params, input_dim, *, compute_dtype=jnp.bfloat16):
    """One-time pad/cast of (W, b) pairs to lane-dense, VMEM-friendly blocks.

    Hoisted out of the per-call path so each forward does not re-pay a full weight HBM pass.
    W is stored as (in_dim, out_dim) so the kernel computes x @ W + b (== x @ W_pt.T + b).
    Zero padding keeps the math exact (padded lanes stay exactly zero through every layer).
    """
    dims = [input_dim] + [w.shape[1] for (w, _) in params]
    pdims = [_round_up(d, _LANE) for d in dims]
    padded = []
    for l, (w, b) in enumerate(params):
        din, dout = w.shape
        wp = jnp.zeros((pdims[l], pdims[l + 1]), compute_dtype)
        wp = wp.at[:din, :dout].set(w.astype(compute_dtype))
        bp = jnp.zeros((1, pdims[l + 1]), jnp.float32)
        bp = bp.at[0, :dout].set(b.astype(jnp.float32))
        padded.append((wp, bp))
    return padded


def _choose_batch_tile(B: int, max_batch_tile: int) -> int:
    """Near-equal, 8-aligned batch tiles; >=2 grid steps for medium/large batches."""
    if B <= 8:
        return 8
    n_tiles = _cdiv(B, max_batch_tile)
    # >=2 grid steps so input/output DMAs actually pipeline and v7x's 2nd TC gets work.
    if n_tiles < 2 and B >= 128:
        n_tiles = 2
    return _round_up(_cdiv(B, n_tiles), 8)


def _chain_call(xp, layer_params, out_dtype, *, TB, relu_output, compute_dtype):
    """One pallas_call over a chain of layers with all weights VMEM-resident."""
    Bp, d0 = xp.shape
    num_layers = len(layer_params)
    pdims = [d0] + [wp.shape[1] for (wp, _) in layer_params]

    inputs = [xp]
    in_specs = [pl.BlockSpec((TB, d0), lambda i: (i, 0))]
    for (wp, bp) in layer_params:
        inputs += [wp, bp]
        in_specs += [
            # Constant index_map -> DMA'd once, VMEM-resident across the batch grid.
            # Buffered(1): no double-buffering for a block whose index never changes
            # (reclaims ~half the weight footprint; important on v7x's 64 MiB VMEM).
            pl.BlockSpec(wp.shape, lambda i: (0, 0), pipeline_mode=pl.Buffered(1)),
            pl.BlockSpec(bp.shape, lambda i: (0, 0), pipeline_mode=pl.Buffered(1)),
        ]
    out_spec = pl.BlockSpec((TB, pdims[-1]), lambda i: (i, 0))

    # VMEM plan: single-buffered weights/biases + double-buffered x/out tiles + intermediates.
    c_size = jnp.dtype(compute_dtype).itemsize
    o_size = jnp.dtype(out_dtype).itemsize
    w_bytes = sum(wp.size * wp.dtype.itemsize + bp.size * bp.dtype.itemsize
                  for wp, bp in layer_params)
    x_tile = TB * d0 * c_size
    o_tile = TB * pdims[-1] * o_size
    act_bytes = TB * max(pdims) * (4 + c_size)           # f32 accumulator + bf16 copy
    vmem_limit = int(min(max(w_bytes + 2 * x_tile + 2 * o_tile + act_bytes + (4 << 20),
                             32 << 20),
                         64 << 20))                       # stay within v7x physical VMEM

    flops = 2 * Bp * sum(pdims[l] * pdims[l + 1] for l in range(num_layers))
    bytes_accessed = (xp.size * xp.dtype.itemsize + w_bytes + Bp * pdims[-1] * o_size)

    kernel = functools.partial(_mlp_chain_kernel, num_layers=num_layers,
                               relu_output=relu_output, compute_dtype=compute_dtype)

    return pl.pallas_call(
        kernel,
        out_shape=jax.ShapeDtypeStruct((Bp, pdims[-1]), out_dtype),
        grid=(Bp // TB,),
        in_specs=in_specs,
        out_specs=out_spec,
        compiler_params=pltpu.CompilerParams(
            dimension_semantics=("parallel",),            # batch tiles shard across TCs on v7x
            vmem_limit_bytes=vmem_limit,
        ),
        cost_estimate=pl.CostEstimate(flops=flops, transcendentals=0,
                                      bytes_accessed=bytes_accessed),
    )(*inputs)


@functools.partial(jax.jit, static_argnames=("output_dim", "compute_dtype",
                                             "max_batch_tile", "vmem_budget_bytes"))
def customizable_feature_net_forward(x, padded_params, *, output_dim,
                                     compute_dtype=jnp.bfloat16,
                                     max_batch_tile=512,
                                     vmem_budget_bytes=48 << 20):
    """Eval-mode forward of CustomizableFeatureNet.

    x: (B, input_dim) float.  padded_params: output of prepare_feature_net (padded once).
    """
    B, input_dim = x.shape
    pdims = [padded_params[0][0].shape[0]] + [wp.shape[1] for (wp, _) in padded_params]

    TB = _choose_batch_tile(B, max_batch_tile)
    Bp = _round_up(B, TB)

    # Only the activations are padded per call (cheap); weights were padded at init.
    xp = jnp.zeros((Bp, pdims[0]), compute_dtype)
    xp = xp.at[:B, :input_dim].set(x.astype(compute_dtype))

    w_bytes = sum(wp.size * wp.dtype.itemsize + bp.size * bp.dtype.itemsize
                  for wp, bp in padded_params)

    if w_bytes <= vmem_budget_bytes:
        # Fully fused: all weights VMEM-resident, intermediate activations never touch HBM.
        yp = _chain_call(xp, padded_params, x.dtype, TB=TB,
                         relu_output=False, compute_dtype=compute_dtype)
    else:
        # Weight-streaming fallback (e.g. large MLPs on v7x's 64 MiB VMEM): one pallas_call per
        # layer; bf16 activations round-trip through HBM between layers.
        # TODO(synk): K/N-tiled streaming for a single layer whose weights exceed the budget.
        h = xp
        n = len(padded_params)
        for l, layer in enumerate(padded_params):
            last = (l == n - 1)
            h = _chain_call(h, [layer], x.dtype if last else compute_dtype, TB=TB,
                            relu_output=not last, compute_dtype=compute_dtype)
        yp = h

    return yp[:B, :output_dim]


def init_params(key, input_dim, hidden_dims, output_dim, dtype=jnp.float32):
    """Deterministic init mirroring nn.Linear's U(-1/sqrt(fan_in), 1/sqrt(fan_in)).

    Weights stored as (in_dim, out_dim) so the kernel computes y = x @ W + b.
    """
    params = []
    dims = [input_dim] + hidden_dims + [output_dim]
    for in_dim, out_dim in zip(dims[:-1], dims[1:]):
        key, kw, kb = jax.random.split(key, 3)
        bound = 1.0 / (in_dim ** 0.5)
        w = jax.random.uniform(kw, (in_dim, out_dim), dtype, -bound, bound)
        b = jax.random.uniform(kb, (out_dim,), dtype, -bound, bound)
        params.append((w, b))
    return params


if __name__ == "__main__":
    batch = 8
    input_dim = 32
    hidden_dims = [64, 32]
    output_dim = 16

    key = jax.random.PRNGKey(0)
    key, kx = jax.random.split(key)
    x = jax.random.normal(kx, (batch, input_dim), dtype=jnp.float32)

    params = init_params(key, input_dim, hidden_dims, output_dim)
    # One-time pad/cast (hoisted out of the per-call path).
    padded_params = prepare_feature_net(params, input_dim)

    out = customizable_feature_net_forward(x, padded_params, output_dim=output_dim)
    out = jax.block_until_ready(out)
    assert out.shape == (batch, output_dim)

    # Reference using the same bf16-operand / f32-accumulate recipe as the kernel.
    def ref_forward_bf16(x, params):
        h = x.astype(jnp.bfloat16)
        n = len(params)
        y = None
        for l, (w, b) in enumerate(params):
            y = jnp.dot(h, w.astype(jnp.bfloat16),
                        preferred_element_type=jnp.float32) + b.astype(jnp.float32)
            if l < n - 1:
                y = jnp.maximum(y, 0.0)
                h = y.astype(jnp.bfloat16)
        return y.astype(x.dtype)

    # Full-precision reference (PyTorch eval-mode semantics) for a looser sanity check.
    def ref_forward_f32(x, params):
        *hidden, (w_out, b_out) = params
        for w, b in hidden:
            x = jnp.maximum(x @ w + b, 0.0)
        return x @ w_out + b_out

    ref_bf16 = ref_forward_bf16(x, params)
    ref_f32 = ref_forward_f32(x, params)
    assert jnp.allclose(out, ref_bf16, atol=1e-2, rtol=1e-2)
    assert jnp.allclose(out, ref_f32, atol=5e-2, rtol=5e-2)

    # Also exercise the weight-streaming fallback path (forced via a tiny VMEM budget).
    out_stream = customizable_feature_net_forward(x, padded_params, output_dim=output_dim,
                                                  vmem_budget_bytes=1)
    out_stream = jax.block_until_ready(out_stream)
    assert out_stream.shape == (batch, output_dim)
    assert jnp.allclose(out_stream, ref_bf16, atol=1e-2, rtol=1e-2)
    assert jnp.allclose(out_stream, ref_f32, atol=5e-2, rtol=5e-2)

    print("KERNEL_OK")
</pallas_src>

<mosaic_0001>
module attributes {stable_mosaic.version = 11 : i64} {
  func.func @_mlp_chain_kernel(%arg0: i32, %arg1: memref<8x128xbf16, #tpu.memory_space<vmem>>, %arg2: memref<128x128xbf16, #tpu.memory_space<vmem>>, %arg3: memref<1x128xf32, #tpu.memory_space<vmem>>, %arg4: memref<128x128xbf16, #tpu.memory_space<vmem>>, %arg5: memref<1x128xf32, #tpu.memory_space<vmem>>, %arg6: memref<128x128xbf16, #tpu.memory_space<vmem>>, %arg7: memref<1x128xf32, #tpu.memory_space<vmem>>, %arg8: memref<8x128xf32, #tpu.memory_space<vmem>>) attributes {dimension_semantics = [#tpu.dimension_semantics<parallel>], iteration_bounds = array<i64: 1>, scalar_prefetch = 0 : i64, scratch_operands = 0 : i64, tpu.core_type = #tpu.core_type<tc>, window_params = [{transform_indices = @transform_0, window_bounds = array<i64: 8, 128>}, {pipeline_mode = #tpu.pipeline_mode<synchronous>, transform_indices = @transform_1, window_bounds = array<i64: 128, 128>}, {pipeline_mode = #tpu.pipeline_mode<synchronous>, transform_indices = @transform_2, window_bounds = array<i64: 1, 128>}, {pipeline_mode = #tpu.pipeline_mode<synchronous>, transform_indices = @transform_3, window_bounds = array<i64: 128, 128>}, {pipeline_mode = #tpu.pipeline_mode<synchronous>, transform_indices = @transform_4, window_bounds = array<i64: 1, 128>}, {pipeline_mode = #tpu.pipeline_mode<synchronous>, transform_indices = @transform_5, window_bounds = array<i64: 128, 128>}, {pipeline_mode = #tpu.pipeline_mode<synchronous>, transform_indices = @transform_6, window_bounds = array<i64: 1, 128>}, {transform_indices = @transform_7, window_bounds = array<i64: 8, 128>}]} {
    %c0 = arith.constant 0 : index
    %c0_0 = arith.constant 0 : index
    %0 = vector.load %arg1[%c0, %c0_0] : memref<8x128xbf16, #tpu.memory_space<vmem>>, vector<8x128xbf16>
    %c0_1 = arith.constant 0 : index
    %c0_2 = arith.constant 0 : index
    %1 = vector.load %arg2[%c0_1, %c0_2] : memref<128x128xbf16, #tpu.memory_space<vmem>>, vector<128x128xbf16>
    %c0_3 = arith.constant 0 : index
    %c0_4 = arith.constant 0 : index
    %2 = vector.load %arg3[%c0_3, %c0_4] : memref<1x128xf32, #tpu.memory_space<vmem>>, vector<1x128xf32>
    %cst = arith.constant dense<0.000000e+00> : vector<8x128xf32>
    %3 = tpu.matmul %0, %1, %cst {dimension_numbers = #tpu.dot_dimension_numbers<[1], [0], [0], [1], [0, 0, 1, 1], [], []>} : vector<8x128xbf16>, vector<128x128xbf16>, vector<8x128xf32> -> vector<8x128xf32>
    %4 = vector.broadcast %2 : vector<1x128xf32> to vector<8x128xf32>
    %5 = arith.addf %3, %4 : vector<8x128xf32>
    %6 = arith.truncf %5 : vector<8x128xf32> to vector<8x128xbf16>
    %cst_5 = arith.constant 0.000000e+00 : bf16
    %7 = vector.broadcast %cst_5 : bf16 to vector<8x128xbf16>
    %8 = arith.maximumf %6, %7 : vector<8x128xbf16>
    %c0_6 = arith.constant 0 : index
    %c0_7 = arith.constant 0 : index
    %9 = vector.load %arg4[%c0_6, %c0_7] : memref<128x128xbf16, #tpu.memory_space<vmem>>, vector<128x128xbf16>
    %c0_8 = arith.constant 0 : index
    %c0_9 = arith.constant 0 : index
    %10 = vector.load %arg5[%c0_8, %c0_9] : memref<1x128xf32, #tpu.memory_space<vmem>>, vector<1x128xf32>
    %cst_10 = arith.constant dense<0.000000e+00> : vector<8x128xf32>
    %11 = tpu.matmul %8, %9, %cst_10 {dimension_numbers = #tpu.dot_dimension_numbers<[1], [0], [0], [1], [0, 0, 1, 1], [], []>} : vector<8x128xbf16>, vector<128x128xbf16>, vector<8x128xf32> -> vector<8x128xf32>
    %12 = vector.broadcast %10 : vector<1x128xf32> to vector<8x128xf32>
    %13 = arith.addf %11, %12 : vector<8x128xf32>
    %14 = arith.truncf %13 : vector<8x128xf32> to vector<8x128xbf16>
    %cst_11 = arith.constant 0.000000e+00 : bf16
    %15 = vector.broadcast %cst_11 : bf16 to vector<8x128xbf16>
    %16 = arith.maximumf %14, %15 : vector<8x128xbf16>
    %c0_12 = arith.constant 0 : index
    %c0_13 = arith.constant 0 : index
    %17 = vector.load %arg6[%c0_12, %c0_13] : memref<128x128xbf16, #tpu.memory_space<vmem>>, vector<128x128xbf16>
    %c0_14 = arith.constant 0 : index
    %c0_15 = arith.constant 0 : index
    %18 = vector.load %arg7[%c0_14, %c0_15] : memref<1x128xf32, #tpu.memory_space<vmem>>, vector<1x128xf32>
    %cst_16 = arith.constant dense<0.000000e+00> : vector<8x128xf32>
    %19 = tpu.matmul %16, %17, %cst_16 {dimension_numbers = #tpu.dot_dimension_numbers<[1], [0], [0], [1], [0, 0, 1, 1], [], []>} : vector<8x128xbf16>, vector<128x128xbf16>, vector<8x128xf32> -> vector<8x128xf32>
    %20 = vector.broadcast %18 : vector<1x128xf32> to vector<8x128xf32>
    %21 = arith.addf %19, %20 : vector<8x128xf32>
    %c0_17 = arith.constant 0 : index
    %c0_18 = arith.constant 0 : index
    %22 = vector.load %arg8[%c0_17, %c0_18] : memref<8x128xf32, #tpu.memory_space<vmem>>, vector<8x128xf32>
    tpu.vector_store %arg8[%c0_17, %c0_18], %21 {strides = array<i32>} : memref<8x128xf32, #tpu.memory_space<vmem>>, vector<8x128xf32>,
    return
  }
  func.func @transform_0(%arg0: i32) -> (i32, i32) {
    %c0_i32 = arith.constant 0 : i32
    %c0_i32_0 = arith.constant 0 : i32
    return %arg0, %c0_i32 : i32, i32
  }
  func.func @transform_1(%arg0: i32) -> (i32, i32) {
    %c0_i32 = arith.constant 0 : i32
    %c0_i32_0 = arith.constant 0 : i32
    %c0_i32_1 = arith.constant 0 : i32
    return %c0_i32, %c0_i32_0 : i32, i32
  }
  func.func @transform_2(%arg0: i32) -> (i32, i32) {
    %c0_i32 = arith.constant 0 : i32
    %c0_i32_0 = arith.constant 0 : i32
    %c0_i32_1 = arith.constant 0 : i32
    return %c0_i32, %c0_i32_0 : i32, i32
  }
  func.func @transform_3(%arg0: i32) -> (i32, i32) {
    %c0_i32 = arith.constant 0 : i32
    %c0_i32_0 = arith.constant 0 : i32
    %c0_i32_1 = arith.constant 0 : i32
    return %c0_i32, %c0_i32_0 : i32, i32
  }
  func.func @transform_4(%arg0: i32) -> (i32, i32) {
    %c0_i32 = arith.constant 0 : i32
    %c0_i32_0 = arith.constant 0 : i32
    %c0_i32_1 = arith.constant 0 : i32
    return %c0_i32, %c0_i32_0 : i32, i32
  }
  func.func @transform_5(%arg0: i32) -> (i32, i32) {
    %c0_i32 = arith.constant 0 : i32
    %c0_i32_0 = arith.constant 0 : i32
    %c0_i32_1 = arith.constant 0 : i32
    return %c0_i32, %c0_i32_0 : i32, i32
  }
  func.func @transform_6(%arg0: i32) -> (i32, i32) {
    %c0_i32 = arith.constant 0 : i32
    %c0_i32_0 = arith.constant 0 : i32
    %c0_i32_1 = arith.constant 0 : i32
    return %c0_i32, %c0_i32_0 : i32, i32
  }
  func.func @transform_7(%arg0: i32) -> (i32, i32) {
    %c0_i32 = arith.constant 0 : i32
    %c0_i32_0 = arith.constant 0 : i32
    return %arg0, %c0_i32 : i32, i32
  }
}

</mosaic_0001>

<llo_original>
// kernel: customizable_feature_net_forward.1
$region0: #{customizable_feature_net_forward.1}
  #allocation0 [shape = 'u32[]', space=smem, size = 0x4, offset = 0x4, fixed_abs, tag = 'smem constant byte address 0x4 - core index']
  #allocation1 [shape = 'u32[144,128]{1,0:T(1,128)}', space=vmem, size = 0x12000, scoped, tag = 'internal scratch']
  %s0 = inlined_call_operand.vmem [shape: bf16[8,128], index: 0, kind: input, shape index: {}]
  %s1 = inlined_call_operand.hbm [shape: bf16[128,128], index: 1, kind: input, shape index: {}]
  %s2 = inlined_call_operand.vmem [shape: f32[1,128], index: 2, kind: input, shape index: {}]
  %s3 = inlined_call_operand.hbm [shape: bf16[128,128], index: 3, kind: input, shape index: {}]
  %s4 = inlined_call_operand.vmem [shape: f32[1,128], index: 4, kind: input, shape index: {}]
  %s5 = inlined_call_operand.hbm [shape: bf16[128,128], index: 5, kind: input, shape index: {}]
  %s6 = inlined_call_operand.vmem [shape: f32[1,128], index: 6, kind: input, shape index: {}]
  %s7 = inlined_call_operand.hbm [shape: f32[8,128], index: 7, kind: output, shape index: {}]
  %s8 = sld [smem:[#allocation0]]
  $region50: #{customizable_feature_net_forward.1} parent=0
    _
  %s10 = ssub.s32 1, %s8
  %s11 = scalar_select 0, %s10, %s8
  $region1: #{customizable_feature_net_forward.1} parent=0
    #allocation2 [shape = 'u8[32768]{0}', space=vmem, size = 0x8000, scoped, tag = 'input window, operand 1, single buffered']
    #allocation3 [shape = 's32[1]{0}', space=sflag, size = 0x4, scoped, tag = 'scoped memory for customizable_feature_net_forward.1']
    #allocation4 [shape = 's32[1]{0}', space=sflag, size = 0x4, scoped, tag = 'scoped memory for customizable_feature_net_forward.1']
    #allocation5 [shape = 'u8[32768]{0}', space=vmem, size = 0x8000, scoped, tag = 'input window, operand 3, single buffered']
    #allocation6 [shape = 's32[1]{0}', space=sflag, size = 0x4, scoped, tag = 'scoped memory for customizable_feature_net_forward.1']
    #allocation7 [shape = 'u8[32768]{0}', space=vmem, size = 0x8000, scoped, tag = 'input window, operand 5, single buffered']
    #allocation8 [shape = 'u8[4096]{0}', space=vmem, size = 0x1000, scoped, tag = 'output window, operand 0, single buffered']
    %12 = vsyncpa [#allocation3], 0
    %13 = vsyncpa [#allocation6], 0
    %14 = vsyncpa [#allocation4], 0
    // Predicated region
    $region2: #{customizable_feature_net_forward.1} parent=1 // pred_check
      _
    $region3: #{customizable_feature_net_forward.1} parent=1 // pred_check_branch
      %16 = sbr.rel (0) target = $region5
    $region4: #{customizable_feature_net_forward.1} parent=1 // pred_region
      _
    $region5: #{customizable_feature_net_forward.1} parent=1 // pred_fallthru
      _
    // Predicated region
    $region6: #{customizable_feature_net_forward.1} parent=1 // pred_check
      _
    $region7: #{customizable_feature_net_forward.1} parent=1 // pred_check_branch
      %18 = sbr.rel (0) target = $region9
    $region8: #{customizable_feature_net_forward.1} parent=1 // pred_region
      %s20 = ssub.s32 1024, 1024
      %21 = vsyncadd [#allocation3], %s20
      %s22 = sshll.u32 [#allocation2], 4
      %s23 = int_to_ptr.vmem [resolvable:$true] %s22
      %28 = dma.hbm_to_vmem [thread:$0]  %s1, 1024, %s23, [#allocation3], 64, 64, 4
    $region9: #{customizable_feature_net_forward.1} parent=1 // pred_fallthru
      _
    // Predicated region
    $region10: #{customizable_feature_net_forward.1} parent=1 // pred_check
      _
    $region11: #{customizable_feature_net_forward.1} parent=1 // pred_check_branch
      %30 = sbr.rel (0) target = $region13
    $region12: #{customizable_feature_net_forward.1} parent=1 // pred_region
      _
    $region13: #{customizable_feature_net_forward.1} parent=1 // pred_fallthru
      _
    // Predicated region
    $region14: #{customizable_feature_net_forward.1} parent=1 // pred_check
      _
    $region15: #{customizable_feature_net_forward.1} parent=1 // pred_check_branch
      %32 = sbr.rel (0) target = $region17
    $region16: #{customizable_feature_net_forward.1} parent=1 // pred_region
      %s34 = ssub.s32 1024, 1024
      %35 = vsyncadd [#allocation6], %s34
      %s36 = sshll.u32 [#allocation5], 4
      %s37 = int_to_ptr.vmem [resolvable:$true] %s36
      %42 = dma.hbm_to_vmem [thread:$0]  %s3, 1024, %s37, [#allocation6], 64, 64, 4
    $region17: #{customizable_feature_net_forward.1} parent=1 // pred_fallthru
      _
    // Predicated region
    $region18: #{customizable_feature_net_forward.1} parent=1 // pred_check
      _
    $region19: #{customizable_feature_net_forward.1} parent=1 // pred_check_branch
      %44 = sbr.rel (0) target = $region21
    $region20: #{customizable_feature_net_forward.1} parent=1 // pred_region
      _
    $region21: #{customizable_feature_net_forward.1} parent=1 // pred_fallthru
      _
    // Predicated region
    $region22: #{customizable_feature_net_forward.1} parent=1 // pred_check
      _
    $region23: #{customizable_feature_net_forward.1} parent=1 // pred_check_branch
      %46 = sbr.rel (0) target = $region25
    $region24: #{customizable_feature_net_forward.1} parent=1 // pred_region
      %s48 = ssub.s32 1024, 1024
      %49 = vsyncadd [#allocation6], %s48
      %s50 = sshll.u32 [#allocation7], 4
      %s51 = int_to_ptr.vmem [resolvable:$true] %s50
      %56 = dma.hbm_to_vmem [thread:$0]  %s5, 1024, %s51, [#allocation6], 64, 64, 4
    $region25: #{customizable_feature_net_forward.1} parent=1 // pred_fallthru
      _
    // Predicated region
    $region26: #{customizable_feature_net_forward.1} parent=1 // pred_check
      _
    $region27: #{customizable_feature_net_forward.1} parent=1 // pred_check_branch
      %58 = sbr.rel (0) target = $region29
    $region28: #{customizable_feature_net_forward.1} parent=1 // pred_region
      _
    $region29: #{customizable_feature_net_forward.1} parent=1 // pred_fallthru
      _
    // Predicated region
    $region30: #{customizable_feature_net_forward.1} parent=1 // pred_check
      _
    $region31: #{customizable_feature_net_forward.1} parent=1 // pred_check_branch
      %60 = sbr.rel (0) target = $region33
    $region32: #{customizable_feature_net_forward.1} parent=1 // pred_region
      %61 = dma.done [#allocation3], 1024
    $region33: #{customizable_feature_net_forward.1} parent=1 // pred_fallthru
      _
    // Predicated region
    $region34: #{customizable_feature_net_forward.1} parent=1 // pred_check
      _
    $region35: #{customizable_feature_net_forward.1} parent=1 // pred_check_branch
      %63 = sbr.rel (0) target = $region37
    $region36: #{customizable_feature_net_forward.1} parent=1 // pred_region
      %64 = dma.done [#allocation6], 1024
    $region37: #{customizable_feature_net_forward.1} parent=1 // pred_fallthru
      _
    // Predicated region
    $region38: #{customizable_feature_net_forward.1} parent=1 // pred_check
      _
    $region39: #{customizable_feature_net_forward.1} parent=1 // pred_check_branch
      %66 = sbr.rel (0) target = $region41
    $region40: #{customizable_feature_net_forward.1} parent=1 // pred_region
      %67 = dma.done [#allocation6], 1024
    $region41: #{customizable_feature_net_forward.1} parent=1 // pred_fallthru
      _
    %v69 = vld [vmem:[%s0] sm:$0xf]
    %v70 = vld [vmem:[#allocation2] sm:$0xf]
    %v71 = vld [vmem:[#allocation2 + $0x4] sm:$0xf]
    %v72 = vld [vmem:[#allocation2 + $0x8] sm:$0xf]
    %v73 = vld [vmem:[#allocation2 + $0xc] sm:$0xf]
    %v74 = vld [vmem:[#allocation2 + $0x10] sm:$0xf]
    %v75 = vld [vmem:[#allocation2 + $0x14] sm:$0xf]
    %v76 = vld [vmem:[#allocation2 + $0x18] sm:$0xf]
    %v77 = vld [vmem:[#allocation2 + $0x1c] sm:$0xf]
    %v78 = vld [vmem:[#allocation2 + $0x20] sm:$0xf]
    %v79 = vld [vmem:[#allocation2 + $0x24] sm:$0xf]
    %v80 = vld [vmem:[#allocation2 + $0x28] sm:$0xf]
    %v81 = vld [vmem:[#allocation2 + $0x2c] sm:$0xf]
    %v82 = vld [vmem:[#allocation2 + $0x30] sm:$0xf]
    %v83 = vld [vmem:[#allocation2 + $0x34] sm:$0xf]
    %v84 = vld [vmem:[#allocation2 + $0x38] sm:$0xf]
    %v85 = vld [vmem:[#allocation2 + $0x3c] sm:$0xf]
    %v86 = vld [vmem:[%s2] sm:$0x1]
    %v88 = vlaneseq
    %v89 = vshrl.u32 %v88, 7
    %v90 = vsub.s32 0, %v89
    %v91 = vrot.slane %v86, %v90
    %v109 = vunpack.c.l.b16 %v70
    %v110 = vunpack.c.l.b16 %v71
    %v111 = vunpack.c.l.b16 %v72
    %v112 = vunpack.c.l.b16 %v73
    %v113 = vunpack.c.l.b16 %v74
    %v114 = vunpack.c.l.b16 %v75
    %v115 = vunpack.c.l.b16 %v76
    %v116 = vunpack.c.l.b16 %v77
    %v117 = vunpack.c.l.b16 %v78
    %v118 = vunpack.c.l.b16 %v79
    %v119 = vunpack.c.l.b16 %v80
    %v120 = vunpack.c.l.b16 %v81
    %v121 = vunpack.c.l.b16 %v82
    %v122 = vunpack.c.l.b16 %v83
    %v123 = vunpack.c.l.b16 %v84
    %v124 = vunpack.c.l.b16 %v85
    %v125 = vpack.c.b16 %v110, %v109
    %v126 = vpack.c.b16 %v112, %v111
    %v127 = vpack.c.b16 %v114, %v113
    %v128 = vpack.c.b16 %v116, %v115
    %v129 = vpack.c.b16 %v118, %v117
    %v130 = vpack.c.b16 %v120, %v119
    %v131 = vpack.c.b16 %v122, %v121
    %v132 = vpack.c.b16 %v124, %v123
    %141 = vmatprep.subr.bf16.mxu0 0
    %142 = vmatpush1.bf16.msra.mxu0 %v132
    %143 = vmatprep.subr.bf16.mxu0 0
    %144 = vmatpush1.bf16.msra.mxu0 %v131
    %145 = vmatprep.subr.bf16.mxu0 0
    %146 = vmatpush1.bf16.msra.mxu0 %v130
    %147 = vmatprep.subr.bf16.mxu0 0
    %148 = vmatpush1.bf16.msra.mxu0 %v129
    %149 = vmatprep.subr.bf16.mxu0 0
    %150 = vmatpush1.bf16.msra.mxu0 %v128
    %151 = vmatprep.subr.bf16.mxu0 0
    %152 = vmatpush1.bf16.msra.mxu0 %v127
    %153 = vmatprep.subr.bf16.mxu0 0
    %154 = vmatpush1.bf16.msra.mxu0 %v126
    %155 = vmatprep.subr.bf16.mxu0 0
    %156 = vmatpush1.bf16.msra.mxu0 %v125
    %157 = vmatprep.subr.bf16.mxu0 0
    %158 = vmatpush2.bf16.msra.mxu0 0
    %159 = vmatprep.subr.bf16.mxu0 0
    %160 = vmatpush2.bf16.msra.mxu0 0
    %161 = vmatprep.subr.bf16.mxu0 0
    %162 = vmatpush2.bf16.msra.mxu0 0
    %163 = vmatprep.subr.bf16.mxu0 0
    %164 = vmatpush2.bf16.msra.mxu0 0
    %165 = vmatprep.subr.bf16.mxu0 0
    %166 = vmatpush2.bf16.msra.mxu0 0
    %167 = vmatprep.subr.bf16.mxu0 0
    %168 = vmatpush2.bf16.msra.mxu0 0
    %169 = vmatprep.subr.bf16.mxu0 0
    %170 = vmatpush2.bf16.msra.mxu0 0
    %171 = vmatprep.subr.bf16.mxu0 0
    %172 = vmatpush2.bf16.msra.mxu0 0
    %173 = vmatprep.mubr.bf16.mxu0 0
    %174 = vmatmul.mubr.bf16.gmra.mxu0 %v69
    %v175 = vpop.f32.mrf.mxu0
    %v176 = vadd.f32 %v91, %v175
    %v177 = vpop.f32.mrf.mxu0
    %v178 = vpop.f32.mrf.mxu0
    %v179 = vpop.f32.mrf.mxu0
    %180 = vdwg.mxu0
    %v181 = vpack.c.bf16 %v176, %v176
    %v182 = vmax.bf16 %v181, 0
    %v183 = vld [vmem:[#allocation5] sm:$0xf]
    %v184 = vld [vmem:[#allocation5 + $0x4] sm:$0xf]
    %v185 = vld [vmem:[#allocation5 + $0x8] sm:$0xf]
    %v186 = vld [vmem:[#allocation5 + $0xc] sm:$0xf]
    %v187 = vld [vmem:[#allocation5 + $0x10] sm:$0xf]
    %v188 = vld [vmem:[#allocation5 + $0x14] sm:$0xf]
    %v189 = vld [vmem:[#allocation5 + $0x18] sm:$0xf]
    %v190 = vld [vmem:[#allocation5 + $0x1c] sm:$0xf]
    %v191 = vld [vmem:[#allocation5 + $0x20] sm:$0xf]
    %v192 = vld [vmem:[#allocation5 + $0x24] sm:$0xf]
    %v193 = vld [vmem:[#allocation5 + $0x28] sm:$0xf]
    %v194 = vld [vmem:[#allocation5 + $0x2c] sm:$0xf]
    %v195 = vld [vmem:[#allocation5 + $0x30] sm:$0xf]
    %v196 = vld [vmem:[#allocation5 + $0x34] sm:$0xf]
    %v197 = vld [vmem:[#allocation5 + $0x38] sm:$0xf]
    %v198 = vld [vmem:[#allocation5 + $0x3c] sm:$0xf]
    %v199 = vld [vmem:[%s4] sm:$0x1]
    %v201 = vlaneseq
    %v202 = vshrl.u32 %v201, 7
    %v203 = vsub.s32 0, %v202
    %v204 = vrot.slane %v199, %v203
    %v222 = vunpack.c.l.b16 %v183
    %v223 = vunpack.c.l.b16 %v184
    %v224 = vunpack.c.l.b16 %v185
    %v225 = vunpack.c.l.b16 %v186
    %v226 = vunpack.c.l.b16 %v187
    %v227 = vunpack.c.l.b16 %v188
    %v228 = vunpack.c.l.b16 %v189
    %v229 = vunpack.c.l.b16 %v190
    %v230 = vunpack.c.l.b16 %v191
    %v231 = vunpack.c.l.b16 %v192
    %v232 = vunpack.c.l.b16 %v193
    %v233 = vunpack.c.l.b16 %v194
    %v234 = vunpack.c.l.b16 %v195
    %v235 = vunpack.c.l.b16 %v196
    %v236 = vunpack.c.l.b16 %v197
    %v237 = vunpack.c.l.b16 %v198
    %v238 = vpack.c.b16 %v223, %v222
    %v239 = vpack.c.b16 %v225, %v224
    %v240 = vpack.c.b16 %v227, %v226
    %v241 = vpack.c.b16 %v229, %v228
    %v242 = vpack.c.b16 %v231, %v230
    %v243 = vpack.c.b16 %v233, %v232
    %v244 = vpack.c.b16 %v235, %v234
    %v245 = vpack.c.b16 %v237, %v236
    %254 = vmatprep.subr.bf16.mxu0 0
    %255 = vmatpush1.bf16.msra.mxu0 %v245
    %256 = vmatprep.subr.bf16.mxu0 0
    %257 = vmatpush1.bf16.msra.mxu0 %v244
    %258 = vmatprep.subr.bf16.mxu0 0
    %259 = vmatpush1.bf16.msra.mxu0 %v243
    %260 = vmatprep.subr.bf16.mxu0 0
    %261 = vmatpush1.bf16.msra.mxu0 %v242
    %262 = vmatprep.subr.bf16.mxu0 0
    %263 = vmatpush1.bf16.msra.mxu0 %v241
    %264 = vmatprep.subr.bf16.mxu0 0
    %265 = vmatpush1.bf16.msra.mxu0 %v240
    %266 = vmatprep.subr.bf16.mxu0 0
    %267 = vmatpush1.bf16.msra.mxu0 %v239
    %268 = vmatprep.subr.bf16.mxu0 0
    %269 = vmatpush1.bf16.msra.mxu0 %v238
    %270 = vmatprep.subr.bf16.mxu0 0
    %271 = vmatpush2.bf16.msra.mxu0 0
    %272 = vmatprep.subr.bf16.mxu0 0
    %273 = vmatpush2.bf16.msra.mxu0 0
    %274 = vmatprep.subr.bf16.mxu0 0
    %275 = vmatpush2.bf16.msra.mxu0 0
    %276 = vmatprep.subr.bf16.mxu0 0
    %277 = vmatpush2.bf16.msra.mxu0 0
    %278 = vmatprep.subr.bf16.mxu0 0
    %279 = vmatpush2.bf16.msra.mxu0 0
    %280 = vmatprep.subr.bf16.mxu0 0
    %281 = vmatpush2.bf16.msra.mxu0 0
    %282 = vmatprep.subr.bf16.mxu0 0
    %283 = vmatpush2.bf16.msra.mxu0 0
    %284 = vmatprep.subr.bf16.mxu0 0
    %285 = vmatpush2.bf16.msra.mxu0 0
    %286 = vmatprep.mubr.bf16.mxu0 0
    %287 = vmatmul.mubr.bf16.gmra.mxu0 %v182
    %v288 = vpop.f32.mrf.mxu0
    %v289 = vadd.f32 %v204, %v288
    %v290 = vpop.f32.mrf.mxu0
    %v291 = vpop.f32.mrf.mxu0
    %v292 = vpop.f32.mrf.mxu0
    %293 = vdwg.mxu0
    %v294 = vpack.c.bf16 %v289, %v289
    %v295 = vmax.bf16 %v294, 0
    %v296 = vld [vmem:[#allocation7] sm:$0xf]
    %v297 = vld [vmem:[#allocation7 + $0x4] sm:$0xf]
    %v298 = vld [vmem:[#allocation7 + $0x8] sm:$0xf]
    %v299 = vld [vmem:[#allocation7 + $0xc] sm:$0xf]
    %v300 = vld [vmem:[#allocation7 + $0x10] sm:$0xf]
    %v301 = vld [vmem:[#allocation7 + $0x14] sm:$0xf]
    %v302 = vld [vmem:[#allocation7 + $0x18] sm:$0xf]
    %v303 = vld [vmem:[#allocation7 + $0x1c] sm:$0xf]
    %v304 = vld [vmem:[#allocation7 + $0x20] sm:$0xf]
    %v305 = vld [vmem:[#allocation7 + $0x24] sm:$0xf]
    %v306 = vld [vmem:[#allocation7 + $0x28] sm:$0xf]
    %v307 = vld [vmem:[#allocation7 + $0x2c] sm:$0xf]
    %v308 = vld [vmem:[#allocation7 + $0x30] sm:$0xf]
    %v309 = vld [vmem:[#allocation7 + $0x34] sm:$0xf]
    %v310 = vld [vmem:[#allocation7 + $0x38] sm:$0xf]
    %v311 = vld [vmem:[#allocation7 + $0x3c] sm:$0xf]
    %v312 = vld [vmem:[%s6] sm:$0x1]
    %v314 = vlaneseq
    %v315 = vshrl.u32 %v314, 7
    %v316 = vsub.s32 0, %v315
    %v317 = vrot.slane %v312, %v316
    %v335 = vunpack.c.l.b16 %v296
    %v336 = vunpack.c.l.b16 %v297
    %v337 = vunpack.c.l.b16 %v298
    %v338 = vunpack.c.l.b16 %v299
    %v339 = vunpack.c.l.b16 %v300
    %v340 = vunpack.c.l.b16 %v301
    %v341 = vunpack.c.l.b16 %v302
    %v342 = vunpack.c.l.b16 %v303
    %v343 = vunpack.c.l.b16 %v304
    %v344 = vunpack.c.l.b16 %v305
    %v345 = vunpack.c.l.b16 %v306
    %v346 = vunpack.c.l.b16 %v307
    %v347 = vunpack.c.l.b16 %v308
    %v348 = vunpack.c.l.b16 %v309
    %v349 = vunpack.c.l.b16 %v310
    %v350 = vunpack.c.l.b16 %v311
    %v351 = vpack.c.b16 %v336, %v335
    %v352 = vpack.c.b16 %v338, %v337
    %v353 = vpack.c.b16 %v340, %v339
    %v354 = vpack.c.b16 %v342, %v341
    %v355 = vpack.c.b16 %v344, %v343
    %v356 = vpack.c.b16 %v346, %v345
    %v357 = vpack.c.b16 %v348, %v347
    %v358 = vpack.c.b16 %v350, %v349
    %367 = vmatprep.subr.bf16.mxu0 0
    %368 = vmatpush1.bf16.msra.mxu0 %v358
    %369 = vmatprep.subr.bf16.mxu0 0
    %370 = vmatpush1.bf16.msra.mxu0 %v357
    %371 = vmatprep.subr.bf16.mxu0 0
    %372 = vmatpush1.bf16.msra.mxu0 %v356
    %373 = vmatprep.subr.bf16.mxu0 0
    %374 = vmatpush1.bf16.msra.mxu0 %v355
    %375 = vmatprep.subr.bf16.mxu0 0
    %376 = vmatpush1.bf16.msra.mxu0 %v354
    %377 = vmatprep.subr.bf16.mxu0 0
    %378 = vmatpush1.bf16.msra.mxu0 %v353
    %379 = vmatprep.subr.bf16.mxu0 0
    %380 = vmatpush1.bf16.msra.mxu0 %v352
    %381 = vmatprep.subr.bf16.mxu0 0
    %382 = vmatpush1.bf16.msra.mxu0 %v351
    %383 = vmatprep.subr.bf16.mxu0 0
    %384 = vmatpush2.bf16.msra.mxu0 0
    %385 = vmatprep.subr.bf16.mxu0 0
    %386 = vmatpush2.bf16.msra.mxu0 0
    %387 = vmatprep.subr.bf16.mxu0 0
    %388 = vmatpush2.bf16.msra.mxu0 0
    %389 = vmatprep.subr.bf16.mxu0 0
    %390 = vmatpush2.bf16.msra.mxu0 0
    %391 = vmatprep.subr.bf16.mxu0 0
    %392 = vmatpush2.bf16.msra.mxu0 0
    %393 = vmatprep.subr.bf16.mxu0 0
    %394 = vmatpush2.bf16.msra.mxu0 0
    %395 = vmatprep.subr.bf16.mxu0 0
    %396 = vmatpush2.bf16.msra.mxu0 0
    %397 = vmatprep.subr.bf16.mxu0 0
    %398 = vmatpush2.bf16.msra.mxu0 0
    %399 = vmatprep.mubr.bf16.mxu0 0
    %400 = vmatmul.mubr.bf16.gmra.mxu0 %v295
    %v401 = vpop.f32.mrf.mxu0
    %v402 = vadd.f32 %v317, %v401
    %v403 = vpop.f32.mrf.mxu0
    %v404 = vpop.f32.mrf.mxu0
    %v405 = vpop.f32.mrf.mxu0
    %406 = vdwg.mxu0
    %407 = vst [vmem:[#allocation8] sm:$0xff] %v402
    // Predicated region
    $region42: #{customizable_feature_net_forward.1} parent=1 // pred_check
      _
    $region43: #{customizable_feature_net_forward.1} parent=1 // pred_check_branch
      %409 = sbr.rel (0) target = $region45
    $region44: #{customizable_feature_net_forward.1} parent=1 // pred_region
      %s411 = ssub.s32 128, 128
      %412 = vsyncadd [#allocation4], %s411
      %s414 = sshll.u32 [#allocation8], 4
      %s415 = int_to_ptr.vmem [resolvable:$true] %s414
      %417 = dma.vmem_to_hbm [thread:$0]  %s415, 128, %s7, [#allocation4]
    $region45: #{customizable_feature_net_forward.1} parent=1 // pred_fallthru
      _
    // Predicated region
    $region46: #{customizable_feature_net_forward.1} parent=1 // pred_check
      _
    $region47: #{customizable_feature_net_forward.1} parent=1 // pred_check_branch
      %419 = sbr.rel (0) target = $region49
    $region48: #{customizable_feature_net_forward.1} parent=1 // pred_region
      %420 = dma.done [#allocation4], 128
    $region49: #{customizable_feature_net_forward.1} parent=1 // pred_fallthru
      _
    %421 = vsyncpa [#allocation3], 1
    %422 = vsyncpa [#allocation6], 1
    %423 = vsyncpa [#allocation4], 1

</llo_original>
